<compile_context>
chip_gen: v5e
topology: v5e:2x2
jax: 0.10.0
libtpu: 0.0.40
codegen_flags: <defaults>
</compile_context>

<pallas_src>
import functools

import jax
import jax.numpy as jnp
from jax.experimental import pallas as pl
from jax.experimental.pallas import tpu as pltpu


def _round_up(x, m):
    return ((x + m - 1) // m) * m


def _covar_kernel(obs_ref, sigma_ref, out_ref, feats_ref, *,
                  n_action_dims, d_pad, d_in, bias):
    # obs_ref:   (B, d_in)          raw observation rows
    # sigma_ref: (D_pad, A*D_pad)   cached, zero-padded Sigma stacked along lanes
    # out_ref:   (A, B, B)          covariance output, stored directly per action
    # feats_ref: (B, D_pad) VMEM    scratch for the padded [1 | obs | 0] rows
    b = obs_ref.shape[0]
    off = 1 if bias else 0

    # Build padded feature rows [1 | obs | 0] entirely in VMEM (folds _prepend_unit
    # and lane padding into the kernel; zero padding is mathematically inert).
    lane = jax.lax.broadcasted_iota(jnp.int32, (b, d_pad), 1)
    feats_ref[...] = jnp.where(lane < off, 1.0, 0.0).astype(feats_ref.dtype)
    feats_ref[:, off:off + d_in] = obs_ref[...]
    feats = feats_ref[...]                                            # (B, D_pad)

    # Stage 1: one wide MXU matmul covering all action dims.
    tmp = jnp.dot(feats, sigma_ref[...],
                  preferred_element_type=jnp.float32)                 # (B, A*D_pad)

    # Stage 2: per-action contraction with obs^T folded into the dot_general
    # (no XLU transpose); each (B, B) tile is stored straight into (A, B, B) —
    # no concatenate, no wrapper-side transpose.  A is small, statically unrolled.
    for a in range(n_action_dims):
        tmp_a = tmp[:, a * d_pad:(a + 1) * d_pad]                     # 128-lane-aligned slice
        out_ref[a] = jax.lax.dot_general(
            tmp_a, feats,
            dimension_numbers=(((1,), (1,)), ((), ())),               # contract feature axes
            preferred_element_type=jnp.float32)                       # (B, B)


def prepare_covariance(covariance_matrix):
    """Parameter-time prep of Sigma.  Cache the result alongside the parameter and
    rebuild it only when `update()` modifies covariance_matrix — NOT per forward.

    Pads each (D, D) Sigma to the 128-lane width and stacks the A matrices along the
    lane axis -> (D_pad, A*D_pad), so the kernel's stage-1 matmul covers all action
    dims in a single MXU pass.
    """
    A, D, _ = covariance_matrix.shape
    d_pad = _round_up(D, 128)
    sigma = covariance_matrix.astype(jnp.float32)
    sigma_p = jnp.pad(sigma, ((0, 0), (0, d_pad - D), (0, d_pad - D)))
    return jnp.transpose(sigma_p, (1, 0, 2)).reshape(d_pad, A * d_pad)


@functools.partial(jax.jit, static_argnames=("bias",))
def online_variance_forward(observation, sigma_stacked, *, bias=True):
    """Pallas equivalent of _OnlineVarianceABC.forward.

    observation:   (B, input_size) or (input_size,) float32
    sigma_stacked: (D_pad, A*D_pad) from prepare_covariance(covariance_matrix)
    returns covar: (n_action_dims, B, B) float32
    """
    if observation.ndim == 1:
        observation = observation[None, :]                            # unsqueeze(0)

    # TODO(synk): test_featuriser is abstract in the ABC; identity featuriser used here.
    obs = observation.astype(jnp.float32)
    B, d_in = obs.shape
    d_pad = sigma_stacked.shape[0]
    n_action_dims = sigma_stacked.shape[1] // d_pad
    assert d_in + int(bias) <= d_pad

    flops = 2 * B * d_pad * (n_action_dims * d_pad) + 2 * n_action_dims * B * B * d_pad
    bytes_accessed = 4 * (obs.size + sigma_stacked.size + n_action_dims * B * B)

    covar = pl.pallas_call(
        functools.partial(_covar_kernel, n_action_dims=n_action_dims,
                          d_pad=d_pad, d_in=d_in, bias=bias),
        out_shape=jax.ShapeDtypeStruct((n_action_dims, B, B), jnp.float32),
        scratch_shapes=[pltpu.VMEM((B, d_pad), jnp.float32)],
        cost_estimate=pl.CostEstimate(flops=flops, transcendentals=0,
                                      bytes_accessed=bytes_accessed),
    )(obs, sigma_stacked)

    # TODO(synk): _covar2uncertainty is abstract in the ABC (defined only in subclasses);
    # returning the raw covariance matrix here.
    return covar


def _reference_forward(observation, covariance_matrix, *, bias=True):
    if observation.ndim == 1:
        observation = observation[None, :]
    feats = observation
    if bias:
        ones = jnp.ones(feats.shape[:-1] + (1,), dtype=feats.dtype)
        feats = jnp.concatenate((ones, feats), axis=-1)
    # (B,D) @ (A,D,D) -> (A,B,D); (A,B,D) @ (D,B) -> (A,B,B)
    return jnp.einsum("bd,ade,ce->abc", feats, covariance_matrix, feats)


if __name__ == "__main__":
    key = jax.random.PRNGKey(0)

    batch = 8
    input_size = 32
    n_action_dims = 4
    bias = True
    prior_variance = 0.5
    D = input_size + int(bias)

    # Deterministic parameter init, per __init__:
    # covariance_matrix = prior_variance * stack([eye(D)] * n_action_dims)
    covariance_matrix = prior_variance * jnp.stack(
        [jnp.eye(D, dtype=jnp.float32) for _ in range(n_action_dims)]
    )
    observation = jax.random.normal(key, (batch, input_size), dtype=jnp.float32)

    # Parameter-time prep: computed once and cached (would be rebuilt only in update()).
    sigma_stacked = jax.block_until_ready(prepare_covariance(covariance_matrix))

    covar = online_variance_forward(observation, sigma_stacked, bias=bias)
    covar = jax.block_until_ready(covar)

    ref = _reference_forward(observation, covariance_matrix, bias=bias)
    assert covar.shape == (n_action_dims, batch, batch), covar.shape
    assert jnp.allclose(covar, ref, atol=1e-4, rtol=1e-4), (
        float(jnp.max(jnp.abs(covar - ref)))
    )

    print("KERNEL_OK")
</pallas_src>

<mosaic_0001>
module attributes {stable_mosaic.version = 11 : i64} {
  func.func @_covar_kernel(%arg0: memref<8x32xf32, #tpu.memory_space<vmem>>, %arg1: memref<128x512xf32, #tpu.memory_space<vmem>>, %arg2: memref<4x8x8xf32, #tpu.memory_space<vmem>>, %arg3: memref<8x128xf32, #tpu.memory_space<vmem>>) attributes {dimension_semantics = [], scalar_prefetch = 0 : i64, scratch_operands = 1 : i64, tpu.core_type = #tpu.core_type<tc>} {
    %0 = tpu.iota {dimensions = array<i32: 1>} : vector<8x128xi32>
    %c1_i32 = arith.constant 1 : i32
    %1 = vector.broadcast %c1_i32 : i32 to vector<8x128xi32>
    %2 = arith.cmpi slt, %0, %1 : vector<8x128xi32>
    %cst = arith.constant 1.000000e+00 : f32
    %cst_0 = arith.constant 0.000000e+00 : f32
    %3 = vector.broadcast %cst : f32 to vector<8x128xf32>
    %4 = vector.broadcast %cst_0 : f32 to vector<8x128xf32>
    %5 = arith.select %2, %3, %4 : vector<8x128xi1>, vector<8x128xf32>
    %c0 = arith.constant 0 : index
    %c0_1 = arith.constant 0 : index
    %6 = vector.load %arg3[%c0, %c0_1] : memref<8x128xf32, #tpu.memory_space<vmem>>, vector<8x128xf32>
    tpu.vector_store %arg3[%c0, %c0_1], %5 {strides = array<i32>} : memref<8x128xf32, #tpu.memory_space<vmem>>, vector<8x128xf32>,
    %c0_2 = arith.constant 0 : index
    %c0_3 = arith.constant 0 : index
    %7 = vector.load %arg0[%c0_2, %c0_3] : memref<8x32xf32, #tpu.memory_space<vmem>>, vector<8x32xf32>
    %c0_4 = arith.constant 0 : index
    %c1 = arith.constant 1 : index
    %8 = vector.load %arg3[%c0_4, %c1] : memref<8x128xf32, #tpu.memory_space<vmem>>, vector<8x32xf32>
    tpu.vector_store %arg3[%c0_4, %c1], %7 {strides = array<i32>} : memref<8x128xf32, #tpu.memory_space<vmem>>, vector<8x32xf32>,
    %c0_5 = arith.constant 0 : index
    %c0_6 = arith.constant 0 : index
    %9 = vector.load %arg3[%c0_5, %c0_6] : memref<8x128xf32, #tpu.memory_space<vmem>>, vector<8x128xf32>
    %c0_7 = arith.constant 0 : index
    %c0_8 = arith.constant 0 : index
    %10 = vector.load %arg1[%c0_7, %c0_8] : memref<128x512xf32, #tpu.memory_space<vmem>>, vector<128x512xf32>
    %cst_9 = arith.constant dense<0.000000e+00> : vector<8x512xf32>
    %11 = tpu.matmul %9, %10, %cst_9 {dimension_numbers = #tpu.dot_dimension_numbers<[1], [0], [0], [1], [0, 0, 1, 1], [], []>} : vector<8x128xf32>, vector<128x512xf32>, vector<8x512xf32> -> vector<8x512xf32>
    %12 = vector.extract_strided_slice %11 {offsets = [0, 0], sizes = [8, 128], strides = [1, 1]} : vector<8x512xf32> to vector<8x128xf32>
    %cst_10 = arith.constant dense<0.000000e+00> : vector<8x8xf32>
    %13 = tpu.matmul %12, %9, %cst_10 {dimension_numbers = #tpu.dot_dimension_numbers<[1], [1], [0], [0], [0, 0, 1, 0], [], []>} : vector<8x128xf32>, vector<8x128xf32>, vector<8x8xf32> -> vector<8x8xf32>
    %c0_11 = arith.constant 0 : index
    %c0_12 = arith.constant 0 : index
    %c0_13 = arith.constant 0 : index
    %14 = vector.load %arg2[%c0_11, %c0_12, %c0_13] : memref<4x8x8xf32, #tpu.memory_space<vmem>>, vector<1x8x8xf32>
    %15 = vector.shape_cast %14 : vector<1x8x8xf32> to vector<8x8xf32>
    %16 = vector.shape_cast %13 : vector<8x8xf32> to vector<1x8x8xf32>
    tpu.vector_store %arg2[%c0_11, %c0_12, %c0_13], %16 {strides = array<i32>} : memref<4x8x8xf32, #tpu.memory_space<vmem>>, vector<1x8x8xf32>,
    %17 = vector.extract_strided_slice %11 {offsets = [0, 128], sizes = [8, 128], strides = [1, 1]} : vector<8x512xf32> to vector<8x128xf32>
    %cst_14 = arith.constant dense<0.000000e+00> : vector<8x8xf32>
    %18 = tpu.matmul %17, %9, %cst_14 {dimension_numbers = #tpu.dot_dimension_numbers<[1], [1], [0], [0], [0, 0, 1, 0], [], []>} : vector<8x128xf32>, vector<8x128xf32>, vector<8x8xf32> -> vector<8x8xf32>
    %c1_15 = arith.constant 1 : index
    %c0_16 = arith.constant 0 : index
    %c0_17 = arith.constant 0 : index
    %19 = vector.load %arg2[%c1_15, %c0_16, %c0_17] : memref<4x8x8xf32, #tpu.memory_space<vmem>>, vector<1x8x8xf32>
    %20 = vector.shape_cast %19 : vector<1x8x8xf32> to vector<8x8xf32>
    %21 = vector.shape_cast %18 : vector<8x8xf32> to vector<1x8x8xf32>
    tpu.vector_store %arg2[%c1_15, %c0_16, %c0_17], %21 {strides = array<i32>} : memref<4x8x8xf32, #tpu.memory_space<vmem>>, vector<1x8x8xf32>,
    %22 = vector.extract_strided_slice %11 {offsets = [0, 256], sizes = [8, 128], strides = [1, 1]} : vector<8x512xf32> to vector<8x128xf32>
    %cst_18 = arith.constant dense<0.000000e+00> : vector<8x8xf32>
    %23 = tpu.matmul %22, %9, %cst_18 {dimension_numbers = #tpu.dot_dimension_numbers<[1], [1], [0], [0], [0, 0, 1, 0], [], []>} : vector<8x128xf32>, vector<8x128xf32>, vector<8x8xf32> -> vector<8x8xf32>
    %c2 = arith.constant 2 : index
    %c0_19 = arith.constant 0 : index
    %c0_20 = arith.constant 0 : index
    %24 = vector.load %arg2[%c2, %c0_19, %c0_20] : memref<4x8x8xf32, #tpu.memory_space<vmem>>, vector<1x8x8xf32>
    %25 = vector.shape_cast %24 : vector<1x8x8xf32> to vector<8x8xf32>
    %26 = vector.shape_cast %23 : vector<8x8xf32> to vector<1x8x8xf32>
    tpu.vector_store %arg2[%c2, %c0_19, %c0_20], %26 {strides = array<i32>} : memref<4x8x8xf32, #tpu.memory_space<vmem>>, vector<1x8x8xf32>,
    %27 = vector.extract_strided_slice %11 {offsets = [0, 384], sizes = [8, 128], strides = [1, 1]} : vector<8x512xf32> to vector<8x128xf32>
    %cst_21 = arith.constant dense<0.000000e+00> : vector<8x8xf32>
    %28 = tpu.matmul %27, %9, %cst_21 {dimension_numbers = #tpu.dot_dimension_numbers<[1], [1], [0], [0], [0, 0, 1, 0], [], []>} : vector<8x128xf32>, vector<8x128xf32>, vector<8x8xf32> -> vector<8x8xf32>
    %c3 = arith.constant 3 : index
    %c0_22 = arith.constant 0 : index
    %c0_23 = arith.constant 0 : index
    %29 = vector.load %arg2[%c3, %c0_22, %c0_23] : memref<4x8x8xf32, #tpu.memory_space<vmem>>, vector<1x8x8xf32>
    %30 = vector.shape_cast %29 : vector<1x8x8xf32> to vector<8x8xf32>
    %31 = vector.shape_cast %28 : vector<8x8xf32> to vector<1x8x8xf32>
    tpu.vector_store %arg2[%c3, %c0_22, %c0_23], %31 {strides = array<i32>} : memref<4x8x8xf32, #tpu.memory_space<vmem>>, vector<1x8x8xf32>,
    return
  }
}

</mosaic_0001>

<llo_original>
// kernel: online_variance_forward.1
$region0: #{online_variance_forward.1}
  #allocation0 [shape = 'u32[]', space=smem, size = 0x4, offset = 0x4, fixed_abs, tag = 'smem constant byte address 0x4 - core index']
  #allocation1 [shape = 'u32[72,128]{1,0:T(1,128)}', space=vmem, size = 0x9000, scoped, tag = 'internal scratch']
  #allocation2 [shape = 'f32[8,128]{1,0:T(8,128)}', space=vmem, size = 0x1000, scoped, tag = 'scratch operand']
  %s0 = inlined_call_operand.hbm [shape: f32[8,32], index: 0, kind: input, shape index: {}]
  %s1 = inlined_call_operand.hbm [shape: f32[128,512], index: 1, kind: input, shape index: {}]
  %s2 = inlined_call_operand.hbm [shape: f32[4,8,8], index: 2, kind: output, shape index: {}]
  %s3 = sld [smem:[#allocation0]]
  $region26: #{online_variance_forward.1} parent=0
    _
  %s5 = ssub.s32 1, %s3
  %s6 = scalar_select 0, %s5, %s3
  $region1: #{online_variance_forward.1} parent=0
    #allocation3 [shape = 'u8[4096]{0}', space=vmem, size = 0x1000, scoped, tag = 'input window, operand 0, single buffered']
    #allocation4 [shape = 's32[1]{0}', space=sflag, size = 0x4, scoped, tag = 'scoped memory for online_variance_forward.1']
    #allocation5 [shape = 's32[1]{0}', space=sflag, size = 0x4, scoped, tag = 'scoped memory for online_variance_forward.1']
    #allocation6 [shape = 'u8[262144]{0}', space=vmem, size = 0x40000, scoped, tag = 'input window, operand 1, single buffered']
    #allocation7 [shape = 's32[1]{0}', space=sflag, size = 0x4, scoped, tag = 'scoped memory for online_variance_forward.1']
    #allocation8 [shape = 'u8[16384]{0}', space=vmem, size = 0x4000, scoped, tag = 'output window, operand 0, single buffered']
    %7 = vsyncpa [#allocation4], 0
    %8 = vsyncpa [#allocation7], 0
    %9 = vsyncpa [#allocation5], 0
    // Predicated region
    $region2: #{online_variance_forward.1} parent=1 // pred_check
      _
    $region3: #{online_variance_forward.1} parent=1 // pred_check_branch
      %11 = sbr.rel (0) target = $region5
    $region4: #{online_variance_forward.1} parent=1 // pred_region
      %13 = vsyncadd [#allocation4], 0
      %s15 = sshll.u32 %s0, 4
      %s16 = int_to_ptr.hbm [resolvable:$true] %s15
      %s17 = sshll.u32 [#allocation3], 4
      %s18 = int_to_ptr.vmem [resolvable:$true] %s17
      %20 = dma.hbm_to_vmem [thread:$0]  %s16, 128, %s18, [#allocation4]
    $region5: #{online_variance_forward.1} parent=1 // pred_fallthru
      _
    // Predicated region
    $region6: #{online_variance_forward.1} parent=1 // pred_check
      _
    $region7: #{online_variance_forward.1} parent=1 // pred_check_branch
      %22 = sbr.rel (0) target = $region9
    $region8: #{online_variance_forward.1} parent=1 // pred_region
      %24 = vsyncadd [#allocation7], 0
      %s25 = sshll.u32 %s1, 4
      %s26 = int_to_ptr.hbm [resolvable:$true] %s25
      %s27 = sshll.u32 [#allocation6], 4
      %s28 = int_to_ptr.vmem [resolvable:$true] %s27
      %33 = dma.hbm_to_vmem [thread:$0]  %s26, 8192, %s28, [#allocation7], 512, 512, 32
    $region9: #{online_variance_forward.1} parent=1 // pred_fallthru
      _
    // Predicated region
    $region10: #{online_variance_forward.1} parent=1 // pred_check
      _
    $region11: #{online_variance_forward.1} parent=1 // pred_check_branch
      %35 = sbr.rel (0) target = $region13
    $region12: #{online_variance_forward.1} parent=1 // pred_region
      %37 = dma.done [#allocation4], 128
    $region13: #{online_variance_forward.1} parent=1 // pred_fallthru
      _
    // Predicated region
    $region14: #{online_variance_forward.1} parent=1 // pred_check
      _
    $region15: #{online_variance_forward.1} parent=1 // pred_check_branch
      %39 = sbr.rel (0) target = $region17
    $region16: #{online_variance_forward.1} parent=1 // pred_region
      %41 = dma.done [#allocation7], 8192
    $region17: #{online_variance_forward.1} parent=1 // pred_fallthru
      _
    %v42 = vlaneseq
    %v43 = vand.u32 %v42, 127
    %vm44 = vcmp.lt.s32.totalorder %v43, 1
    %v45 = vsel %vm44, 1.0, 0.0
    %46 = vst [vmem:[#allocation2] sm:$0xff] %v45
    %v47 = vld [vmem:[#allocation3] sm:$0xff]
    %49 = vrot.lane.b32.xlu0 %v47, 1
    %v50 = vpop.permute.xlu0 %49
    %vm52 = vcmask 269320
    %53 = vst.msk [vmem:[#allocation2] sm:$0xff] %vm52, %v50
    %v54 = vld [vmem:[#allocation2] sm:$0xff]
    %v55 = vld [vmem:[#allocation6] sm:$0xff]
    %v56 = vld [vmem:[#allocation6 + $0x8] sm:$0xff]
    %v57 = vld [vmem:[#allocation6 + $0x10] sm:$0xff]
    %v58 = vld [vmem:[#allocation6 + $0x18] sm:$0xff]
    %v59 = vld [vmem:[#allocation6 + $0x20] sm:$0xff]
    %v60 = vld [vmem:[#allocation6 + $0x28] sm:$0xff]
    %v61 = vld [vmem:[#allocation6 + $0x30] sm:$0xff]
    %v62 = vld [vmem:[#allocation6 + $0x38] sm:$0xff]
    %v63 = vld [vmem:[#allocation6 + $0x40] sm:$0xff]
    %v64 = vld [vmem:[#allocation6 + $0x48] sm:$0xff]
    %v65 = vld [vmem:[#allocation6 + $0x50] sm:$0xff]
    %v66 = vld [vmem:[#allocation6 + $0x58] sm:$0xff]
    %v67 = vld [vmem:[#allocation6 + $0x60] sm:$0xff]
    %v68 = vld [vmem:[#allocation6 + $0x68] sm:$0xff]
    %v69 = vld [vmem:[#allocation6 + $0x70] sm:$0xff]
    %v70 = vld [vmem:[#allocation6 + $0x78] sm:$0xff]
    %v71 = vld [vmem:[#allocation6 + $0x80] sm:$0xff]
    %v72 = vld [vmem:[#allocation6 + $0x88] sm:$0xff]
    %v73 = vld [vmem:[#allocation6 + $0x90] sm:$0xff]
    %v74 = vld [vmem:[#allocation6 + $0x98] sm:$0xff]
    %v75 = vld [vmem:[#allocation6 + $0xa0] sm:$0xff]
    %v76 = vld [vmem:[#allocation6 + $0xa8] sm:$0xff]
    %v77 = vld [vmem:[#allocation6 + $0xb0] sm:$0xff]
    %v78 = vld [vmem:[#allocation6 + $0xb8] sm:$0xff]
    %v79 = vld [vmem:[#allocation6 + $0xc0] sm:$0xff]
    %v80 = vld [vmem:[#allocation6 + $0xc8] sm:$0xff]
    %v81 = vld [vmem:[#allocation6 + $0xd0] sm:$0xff]
    %v82 = vld [vmem:[#allocation6 + $0xd8] sm:$0xff]
    %v83 = vld [vmem:[#allocation6 + $0xe0] sm:$0xff]
    %v84 = vld [vmem:[#allocation6 + $0xe8] sm:$0xff]
    %v85 = vld [vmem:[#allocation6 + $0xf0] sm:$0xff]
    %v86 = vld [vmem:[#allocation6 + $0xf8] sm:$0xff]
    %v87 = vld [vmem:[#allocation6 + $0x100] sm:$0xff]
    %v88 = vld [vmem:[#allocation6 + $0x108] sm:$0xff]
    %v89 = vld [vmem:[#allocation6 + $0x110] sm:$0xff]
    %v90 = vld [vmem:[#allocation6 + $0x118] sm:$0xff]
    %v91 = vld [vmem:[#allocation6 + $0x120] sm:$0xff]
    %v92 = vld [vmem:[#allocation6 + $0x128] sm:$0xff]
    %v93 = vld [vmem:[#allocation6 + $0x130] sm:$0xff]
    %v94 = vld [vmem:[#allocation6 + $0x138] sm:$0xff]
    %v95 = vld [vmem:[#allocation6 + $0x140] sm:$0xff]
    %v96 = vld [vmem:[#allocation6 + $0x148] sm:$0xff]
    %v97 = vld [vmem:[#allocation6 + $0x150] sm:$0xff]
    %v98 = vld [vmem:[#allocation6 + $0x158] sm:$0xff]
    %v99 = vld [vmem:[#allocation6 + $0x160] sm:$0xff]
    %v100 = vld [vmem:[#allocation6 + $0x168] sm:$0xff]
    %v101 = vld [vmem:[#allocation6 + $0x170] sm:$0xff]
    %v102 = vld [vmem:[#allocation6 + $0x178] sm:$0xff]
    %v103 = vld [vmem:[#allocation6 + $0x180] sm:$0xff]
    %v104 = vld [vmem:[#allocation6 + $0x188] sm:$0xff]
    %v105 = vld [vmem:[#allocation6 + $0x190] sm:$0xff]
    %v106 = vld [vmem:[#allocation6 + $0x198] sm:$0xff]
    %v107 = vld [vmem:[#allocation6 + $0x1a0] sm:$0xff]
    %v108 = vld [vmem:[#allocation6 + $0x1a8] sm:$0xff]
    %v109 = vld [vmem:[#allocation6 + $0x1b0] sm:$0xff]
    %v110 = vld [vmem:[#allocation6 + $0x1b8] sm:$0xff]
    %v111 = vld [vmem:[#allocation6 + $0x1c0] sm:$0xff]
    %v112 = vld [vmem:[#allocation6 + $0x1c8] sm:$0xff]
    %v113 = vld [vmem:[#allocation6 + $0x1d0] sm:$0xff]
    %v114 = vld [vmem:[#allocation6 + $0x1d8] sm:$0xff]
    %v115 = vld [vmem:[#allocation6 + $0x1e0] sm:$0xff]
    %v116 = vld [vmem:[#allocation6 + $0x1e8] sm:$0xff]
    %v117 = vld [vmem:[#allocation6 + $0x1f0] sm:$0xff]
    %v118 = vld [vmem:[#allocation6 + $0x1f8] sm:$0xff]
    %119 = vmatpush.msra.mxu0 %v115
    %120 = vmatpush.msra.mxu0 %v111
    %121 = vmatpush.msra.mxu0 %v107
    %122 = vmatpush.msra.mxu0 %v103
    %123 = vmatpush.msra.mxu0 %v99
    %124 = vmatpush.msra.mxu0 %v95
    %125 = vmatpush.msra.mxu0 %v91
    %126 = vmatpush.msra.mxu0 %v87
    %127 = vmatpush.msra.mxu0 %v83
    %128 = vmatpush.msra.mxu0 %v79
    %129 = vmatpush.msra.mxu0 %v75
    %130 = vmatpush.msra.mxu0 %v71
    %131 = vmatpush.msra.mxu0 %v67
    %132 = vmatpush.msra.mxu0 %v63
    %133 = vmatpush.msra.mxu0 %v59
    %134 = vmatpush.msra.mxu0 %v55
    %135 = vmatmul.f32.gmra.mxu0 %v54
    %v136 = vpop.f32.mrf.mxu0
    %v137 = vadd.f32 0.0, %v136
    %138 = vdwg.mxu0
    %139 = vmatpush.msra.mxu0 %v116
    %140 = vmatpush.msra.mxu0 %v112
    %141 = vmatpush.msra.mxu0 %v108
    %142 = vmatpush.msra.mxu0 %v104
    %143 = vmatpush.msra.mxu0 %v100
    %144 = vmatpush.msra.mxu0 %v96
    %145 = vmatpush.msra.mxu0 %v92
    %146 = vmatpush.msra.mxu0 %v88
    %147 = vmatpush.msra.mxu0 %v84
    %148 = vmatpush.msra.mxu0 %v80
    %149 = vmatpush.msra.mxu0 %v76
    %150 = vmatpush.msra.mxu0 %v72
    %151 = vmatpush.msra.mxu0 %v68
    %152 = vmatpush.msra.mxu0 %v64
    %153 = vmatpush.msra.mxu0 %v60
    %154 = vmatpush.msra.mxu0 %v56
    %155 = vmatmul.f32.gmra.mxu0 %v54
    %v156 = vpop.f32.mrf.mxu0
    %v157 = vadd.f32 0.0, %v156
    %158 = vdwg.mxu0
    %159 = vmatpush.msra.mxu0 %v117
    %160 = vmatpush.msra.mxu0 %v113
    %161 = vmatpush.msra.mxu0 %v109
    %162 = vmatpush.msra.mxu0 %v105
    %163 = vmatpush.msra.mxu0 %v101
    %164 = vmatpush.msra.mxu0 %v97
    %165 = vmatpush.msra.mxu0 %v93
    %166 = vmatpush.msra.mxu0 %v89
    %167 = vmatpush.msra.mxu0 %v85
    %168 = vmatpush.msra.mxu0 %v81
    %169 = vmatpush.msra.mxu0 %v77
    %170 = vmatpush.msra.mxu0 %v73
    %171 = vmatpush.msra.mxu0 %v69
    %172 = vmatpush.msra.mxu0 %v65
    %173 = vmatpush.msra.mxu0 %v61
    %174 = vmatpush.msra.mxu0 %v57
    %175 = vmatmul.f32.gmra.mxu0 %v54
    %v176 = vpop.f32.mrf.mxu0
    %v177 = vadd.f32 0.0, %v176
    %178 = vdwg.mxu0
    %179 = vmatpush.msra.mxu0 %v118
    %180 = vmatpush.msra.mxu0 %v114
    %181 = vmatpush.msra.mxu0 %v110
    %182 = vmatpush.msra.mxu0 %v106
    %183 = vmatpush.msra.mxu0 %v102
    %184 = vmatpush.msra.mxu0 %v98
    %185 = vmatpush.msra.mxu0 %v94
    %186 = vmatpush.msra.mxu0 %v90
    %187 = vmatpush.msra.mxu0 %v86
    %188 = vmatpush.msra.mxu0 %v82
    %189 = vmatpush.msra.mxu0 %v78
    %190 = vmatpush.msra.mxu0 %v74
    %191 = vmatpush.msra.mxu0 %v70
    %192 = vmatpush.msra.mxu0 %v66
    %193 = vmatpush.msra.mxu0 %v62
    %194 = vmatpush.msra.mxu0 %v58
    %195 = vmatmul.f32.gmra.mxu0 %v54
    %v196 = vpop.f32.mrf.mxu0
    %v197 = vadd.f32 0.0, %v196
    %198 = vdwg.mxu0
    %199 = vmatpush.xpose.msra.mxu0 0.0
    %200 = vmatpush.xpose.msra.mxu0 0.0
    %201 = vmatpush.xpose.msra.mxu0 0.0
    %202 = vmatpush.xpose.msra.mxu0 0.0
    %203 = vmatpush.xpose.msra.mxu0 0.0
    %204 = vmatpush.xpose.msra.mxu0 0.0
    %205 = vmatpush.xpose.msra.mxu0 0.0
    %206 = vmatpush.xpose.msra.mxu0 0.0
    %207 = vmatpush.xpose.msra.mxu0 0.0
    %208 = vmatpush.xpose.msra.mxu0 0.0
    %209 = vmatpush.xpose.msra.mxu0 0.0
    %210 = vmatpush.xpose.msra.mxu0 0.0
    %211 = vmatpush.xpose.msra.mxu0 0.0
    %212 = vmatpush.xpose.msra.mxu0 0.0
    %213 = vmatpush.xpose.msra.mxu0 0.0
    %214 = vmatpush.xpose.msra.mxu0 %v54
    %215 = vmatmul.f32.gmra.mxu0 %v137
    %v216 = vpop.f32.mrf.mxu0
    %v217 = vadd.f32 0.0, %v216
    %218 = vdwg.mxu0
    %vm219 = vcmask 64512
    %220 = vst.msk [vmem:[#allocation8] sm:$0xff] %vm219, %v217
    %221 = vmatpush.xpose.msra.mxu0 0.0
    %222 = vmatpush.xpose.msra.mxu0 0.0
    %223 = vmatpush.xpose.msra.mxu0 0.0
    %224 = vmatpush.xpose.msra.mxu0 0.0
    %225 = vmatpush.xpose.msra.mxu0 0.0
    %226 = vmatpush.xpose.msra.mxu0 0.0
    %227 = vmatpush.xpose.msra.mxu0 0.0
    %228 = vmatpush.xpose.msra.mxu0 0.0
    %229 = vmatpush.xpose.msra.mxu0 0.0
    %230 = vmatpush.xpose.msra.mxu0 0.0
    %231 = vmatpush.xpose.msra.mxu0 0.0
    %232 = vmatpush.xpose.msra.mxu0 0.0
    %233 = vmatpush.xpose.msra.mxu0 0.0
    %234 = vmatpush.xpose.msra.mxu0 0.0
    %235 = vmatpush.xpose.msra.mxu0 0.0
    %236 = vmatpush.xpose.msra.mxu0 %v54
    %237 = vmatmul.f32.gmra.mxu0 %v157
    %v238 = vpop.f32.mrf.mxu0
    %v239 = vadd.f32 0.0, %v238
    %240 = vdwg.mxu0
    %s241 = scalar_lea.vmem [#allocation8], 8
    %242 = vst.msk [vmem:[%s241] sm:$0xff] %vm219, %v239
    %243 = vmatpush.xpose.msra.mxu0 0.0
    %244 = vmatpush.xpose.msra.mxu0 0.0
    %245 = vmatpush.xpose.msra.mxu0 0.0
    %246 = vmatpush.xpose.msra.mxu0 0.0
    %247 = vmatpush.xpose.msra.mxu0 0.0
    %248 = vmatpush.xpose.msra.mxu0 0.0
    %249 = vmatpush.xpose.msra.mxu0 0.0
    %250 = vmatpush.xpose.msra.mxu0 0.0
    %251 = vmatpush.xpose.msra.mxu0 0.0
    %252 = vmatpush.xpose.msra.mxu0 0.0
    %253 = vmatpush.xpose.msra.mxu0 0.0
    %254 = vmatpush.xpose.msra.mxu0 0.0
    %255 = vmatpush.xpose.msra.mxu0 0.0
    %256 = vmatpush.xpose.msra.mxu0 0.0
    %257 = vmatpush.xpose.msra.mxu0 0.0
    %258 = vmatpush.xpose.msra.mxu0 %v54
    %259 = vmatmul.f32.gmra.mxu0 %v177
    %v260 = vpop.f32.mrf.mxu0
    %v261 = vadd.f32 0.0, %v260
    %262 = vdwg.mxu0
    %s263 = scalar_lea.vmem [#allocation8], 16
    %264 = vst.msk [vmem:[%s263] sm:$0xff] %vm219, %v261
    %265 = vmatpush.xpose.msra.mxu0 0.0
    %266 = vmatpush.xpose.msra.mxu0 0.0
    %267 = vmatpush.xpose.msra.mxu0 0.0
    %268 = vmatpush.xpose.msra.mxu0 0.0
    %269 = vmatpush.xpose.msra.mxu0 0.0
    %270 = vmatpush.xpose.msra.mxu0 0.0
    %271 = vmatpush.xpose.msra.mxu0 0.0
    %272 = vmatpush.xpose.msra.mxu0 0.0
    %273 = vmatpush.xpose.msra.mxu0 0.0
    %274 = vmatpush.xpose.msra.mxu0 0.0
    %275 = vmatpush.xpose.msra.mxu0 0.0
    %276 = vmatpush.xpose.msra.mxu0 0.0
    %277 = vmatpush.xpose.msra.mxu0 0.0
    %278 = vmatpush.xpose.msra.mxu0 0.0
    %279 = vmatpush.xpose.msra.mxu0 0.0
    %280 = vmatpush.xpose.msra.mxu0 %v54
    %281 = vmatmul.f32.gmra.mxu0 %v197
    %v282 = vpop.f32.mrf.mxu0
    %v283 = vadd.f32 0.0, %v282
    %284 = vdwg.mxu0
    %s285 = scalar_lea.vmem [#allocation8], 24
    %286 = vst.msk [vmem:[%s285] sm:$0xff] %vm219, %v283
    // Predicated region
    $region18: #{online_variance_forward.1} parent=1 // pred_check
      _
    $region19: #{online_variance_forward.1} parent=1 // pred_check_branch
      %288 = sbr.rel (0) target = $region21
    $region20: #{online_variance_forward.1} parent=1 // pred_region
      %290 = vsyncadd [#allocation5], 0
      %s291 = sshll.u32 [#allocation8], 4
      %s292 = int_to_ptr.vmem [resolvable:$true] %s291
      %s293 = sshll.u32 %s2, 4
      %s294 = int_to_ptr.hbm [resolvable:$true] %s293
      %299 = dma.vmem_to_hbm [thread:$0]  %s292, 512, %s294, [#allocation5], 128, 128, 8
    $region21: #{online_variance_forward.1} parent=1 // pred_fallthru
      _
    // Predicated region
    $region22: #{online_variance_forward.1} parent=1 // pred_check
      _
    $region23: #{online_variance_forward.1} parent=1 // pred_check_branch
      %301 = sbr.rel (0) target = $region25
    $region24: #{online_variance_forward.1} parent=1 // pred_region
      %303 = dma.done [#allocation5], 512
    $region25: #{online_variance_forward.1} parent=1 // pred_fallthru
      _
    %304 = vsyncpa [#allocation4], 1
    %305 = vsyncpa [#allocation7], 1
    %306 = vsyncpa [#allocation5], 1

</llo_original>
